<compile_context>
chip_gen: v7x
topology: tpu7x:2x2x1
jax: 0.10.0
libtpu: 0.0.40
codegen_flags: <defaults>
</compile_context>

<pallas_src>
import math
import functools

import jax
import jax.numpy as jnp
from jax import lax
from jax.experimental import pallas as pl
from jax.experimental.pallas import tpu as pltpu

_VMEM_LIMIT = 32 * 1024 * 1024   # safe on v5e/v6e (128 MiB) and v7x (64 MiB)


def _seq_tile(length, cap=256):
    """Full length if it fits comfortably, else a 256-row (8-aligned) tile."""
    if length <= cap:
        return length
    return cap  # cap is a multiple of 8 -> (8,128)-friendly sublane count


# ----------------------------------------------------------------------------
# Kernel 1: per-head Q projection with the 1/temperature scale folded in.
#   out[h, b, l_tile] = ((x[b, l_tile] @ Wq_h) + bq_h) * scale
# ----------------------------------------------------------------------------
def _q_proj_kernel(x_ref, w_ref, b_ref, o_ref, *, scale):
    y = jnp.dot(x_ref[0], w_ref[0], preferred_element_type=jnp.float32)
    o_ref[0, 0] = ((y + b_ref[0]) * scale).astype(o_ref.dtype)


def q_proj_pallas(x, w_heads, b_heads, scale):
    sz_b, L, d_model = x.shape
    n_head, _, d_h = w_heads.shape
    tl = _seq_tile(L)
    grid = (n_head, sz_b, pl.cdiv(L, tl))
    return pl.pallas_call(
        functools.partial(_q_proj_kernel, scale=scale),
        out_shape=jax.ShapeDtypeStruct((n_head, sz_b, L, d_h), x.dtype),
        grid=grid,
        in_specs=[
            pl.BlockSpec((1, tl, d_model), lambda h, b, l: (b, l, 0)),
            pl.BlockSpec((1, d_model, d_h), lambda h, b, l: (h, 0, 0)),
            pl.BlockSpec((1, 1, d_h), lambda h, b, l: (h, 0, 0)),
        ],
        out_specs=pl.BlockSpec((1, 1, tl, d_h), lambda h, b, l: (h, b, l, 0)),
        compiler_params=pltpu.CompilerParams(
            dimension_semantics=("parallel", "parallel", "parallel"),
            vmem_limit_bytes=_VMEM_LIMIT),
    )(x, w_heads, b_heads)


# ----------------------------------------------------------------------------
# Kernel 2: fused K + V per-head projections (single pallas_call).
# ----------------------------------------------------------------------------
def _kv_proj_kernel(xk_ref, xv_ref, wk_ref, wv_ref, bk_ref, bv_ref,
                    ko_ref, vo_ref):
    yk = jnp.dot(xk_ref[0], wk_ref[0], preferred_element_type=jnp.float32)
    ko_ref[0, 0] = (yk + bk_ref[0]).astype(ko_ref.dtype)
    yv = jnp.dot(xv_ref[0], wv_ref[0], preferred_element_type=jnp.float32)
    vo_ref[0, 0] = (yv + bv_ref[0]).astype(vo_ref.dtype)


def kv_proj_pallas(xk, xv, wk_heads, bk_heads, wv_heads, bv_heads):
    sz_b, L, d_model = xk.shape
    n_head, _, d_k = wk_heads.shape
    d_v = wv_heads.shape[-1]
    tl = _seq_tile(L)
    grid = (n_head, sz_b, pl.cdiv(L, tl))
    return pl.pallas_call(
        _kv_proj_kernel,
        out_shape=(
            jax.ShapeDtypeStruct((n_head, sz_b, L, d_k), xk.dtype),
            jax.ShapeDtypeStruct((n_head, sz_b, L, d_v), xv.dtype),
        ),
        grid=grid,
        in_specs=[
            pl.BlockSpec((1, tl, d_model), lambda h, b, l: (b, l, 0)),
            pl.BlockSpec((1, tl, d_model), lambda h, b, l: (b, l, 0)),
            pl.BlockSpec((1, d_model, d_k), lambda h, b, l: (h, 0, 0)),
            pl.BlockSpec((1, d_model, d_v), lambda h, b, l: (h, 0, 0)),
            pl.BlockSpec((1, 1, d_k), lambda h, b, l: (h, 0, 0)),
            pl.BlockSpec((1, 1, d_v), lambda h, b, l: (h, 0, 0)),
        ],
        out_specs=(
            pl.BlockSpec((1, 1, tl, d_k), lambda h, b, l: (h, b, l, 0)),
            pl.BlockSpec((1, 1, tl, d_v), lambda h, b, l: (h, b, l, 0)),
        ),
        compiler_params=pltpu.CompilerParams(
            dimension_semantics=("parallel", "parallel", "parallel"),
            vmem_limit_bytes=_VMEM_LIMIT),
    )(xk, xv, wk_heads, wv_heads, bk_heads, bv_heads)


# ----------------------------------------------------------------------------
# Kernel 3: scaled dot-product attention.
# Grid = (head, batch, q-tile); q is already pre-scaled by 1/temperature.
# Mask is read un-replicated, per (batch, q-tile) only.
# ----------------------------------------------------------------------------
def _attn_kernel(q_ref, k_ref, v_ref, m_ref, o_ref, a_ref):
    q = q_ref[0, 0]          # (tq, d_k)
    k = k_ref[0, 0]          # (Lk, d_k)
    v = v_ref[0, 0]          # (Lk, d_v)
    m = m_ref[0]             # (tq, Lk) int8

    # q @ k^T via an NT contraction — no materialized transpose.
    s = lax.dot_general(q, k, dimension_numbers=(((1,), (1,)), ((), ())),
                        preferred_element_type=jnp.float32)
    s = jnp.where(m != 0, -jnp.inf, s)          # masked_fill(mask, -inf)

    s_max = jnp.max(s, axis=-1, keepdims=True)  # softmax over keys (f32)
    p = jnp.exp(s - s_max)
    denom = jnp.sum(p, axis=-1, keepdims=True)
    attn = p * pl.reciprocal(denom, approx=True)

    ctx = jnp.dot(attn.astype(v.dtype), v, preferred_element_type=jnp.float32)

    a_ref[0, 0] = attn.astype(a_ref.dtype)
    o_ref[0, 0] = ctx.astype(o_ref.dtype)


def attention_pallas(qh, kh, vh, mask_i8):
    n_head, sz_b, Lq, d_k = qh.shape
    Lk = kh.shape[2]
    d_v = vh.shape[3]
    tq = _seq_tile(Lq)
    grid = (n_head, sz_b, pl.cdiv(Lq, tq))
    ctx, attn = pl.pallas_call(
        _attn_kernel,
        out_shape=(
            jax.ShapeDtypeStruct((n_head, sz_b, Lq, d_v), qh.dtype),
            jax.ShapeDtypeStruct((n_head, sz_b, Lq, Lk), jnp.float32),
        ),
        grid=grid,
        in_specs=[
            pl.BlockSpec((1, 1, tq, d_k), lambda h, b, i: (h, b, i, 0)),
            pl.BlockSpec((1, 1, Lk, d_k), lambda h, b, i: (h, b, 0, 0)),
            pl.BlockSpec((1, 1, Lk, d_v), lambda h, b, i: (h, b, 0, 0)),
            # mask is NOT replicated across heads
            pl.BlockSpec((1, tq, Lk), lambda h, b, i: (b, i, 0)),
        ],
        out_specs=(
            pl.BlockSpec((1, 1, tq, d_v), lambda h, b, i: (h, b, i, 0)),
            pl.BlockSpec((1, 1, tq, Lk), lambda h, b, i: (h, b, i, 0)),
        ),
        compiler_params=pltpu.CompilerParams(
            dimension_semantics=("parallel", "parallel", "parallel"),
            vmem_limit_bytes=_VMEM_LIMIT),
    )(qh, kh, vh, mask_i8)
    return ctx, attn


# ----------------------------------------------------------------------------
# Kernel 4: fc (with head-merge folded into the matmul accumulation)
#           + residual add + LayerNorm(d_model), all fused, f32 math.
#   concat_h(ctx) @ Wfc^T  ==  sum_h ctx[h] @ Wfc^T[h-rows]
# ----------------------------------------------------------------------------
def _fc_res_ln_kernel(ctx_ref, w_ref, b_ref, res_ref, g_ref, beta_ref, o_ref,
                      *, n_head):
    y = jnp.dot(ctx_ref[0, 0], w_ref[0], preferred_element_type=jnp.float32)
    for h in range(1, n_head):     # static Python loop; h is a compile-time int
        y = y + jnp.dot(ctx_ref[h, 0], w_ref[h],
                        preferred_element_type=jnp.float32)
    z = y + b_ref[...] + res_ref[0]
    mu = jnp.mean(z, axis=-1, keepdims=True)
    var = jnp.mean((z - mu) ** 2, axis=-1, keepdims=True)
    zn = (z - mu) * lax.rsqrt(var + 1e-5)
    o_ref[0] = (zn * g_ref[...] + beta_ref[...]).astype(o_ref.dtype)


def fc_residual_layernorm_pallas(ctx, wfc_heads, fc_b, residual, ln_g, ln_b):
    n_head, sz_b, Lq, d_v = ctx.shape
    d_model = wfc_heads.shape[-1]
    tq = _seq_tile(Lq)
    grid = (sz_b, pl.cdiv(Lq, tq))
    return pl.pallas_call(
        functools.partial(_fc_res_ln_kernel, n_head=n_head),
        out_shape=jax.ShapeDtypeStruct((sz_b, Lq, d_model), residual.dtype),
        grid=grid,
        in_specs=[
            pl.BlockSpec((n_head, 1, tq, d_v), lambda b, i: (0, b, i, 0)),
            pl.BlockSpec((n_head, d_v, d_model), lambda b, i: (0, 0, 0)),
            pl.BlockSpec((1, d_model), lambda b, i: (0, 0)),
            pl.BlockSpec((1, tq, d_model), lambda b, i: (b, i, 0)),
            pl.BlockSpec((1, d_model), lambda b, i: (0, 0)),
            pl.BlockSpec((1, d_model), lambda b, i: (0, 0)),
        ],
        out_specs=pl.BlockSpec((1, tq, d_model), lambda b, i: (b, i, 0)),
        compiler_params=pltpu.CompilerParams(
            dimension_semantics=("parallel", "parallel"),
            vmem_limit_bytes=_VMEM_LIMIT),
    )(ctx, wfc_heads, fc_b.reshape(1, d_model), residual,
      ln_g.reshape(1, d_model), ln_b.reshape(1, d_model))


# ----------------------------------------------------------------------------
# MultiHeadAttention forward
# ----------------------------------------------------------------------------
def multi_head_attention(q, k, v, mask, params, *, n_head, d_k, d_v):
    sz_b, len_q, d_model = q.shape
    _, len_k, _ = k.shape
    temperature = float(math.sqrt(d_k))
    residual = q

    # One-time weight layout plumbing (small tensors, outside the hot loop):
    # per-head lane-dense RHS (d_model, d_head), so kernels never transpose.
    wq_h = params["w_qs_w"].reshape(n_head, d_k, d_model).transpose(0, 2, 1)
    wk_h = params["w_ks_w"].reshape(n_head, d_k, d_model).transpose(0, 2, 1)
    wv_h = params["w_vs_w"].reshape(n_head, d_v, d_model).transpose(0, 2, 1)
    bq_h = params["w_qs_b"].reshape(n_head, 1, d_k)
    bk_h = params["w_ks_b"].reshape(n_head, 1, d_k)
    bv_h = params["w_vs_b"].reshape(n_head, 1, d_v)
    # fc weight as per-head (d_v, d_model) row-blocks of W^T
    wfc_h = params["fc_w"].reshape(d_model, n_head, d_v).transpose(1, 2, 0)

    # Projections write head-major blocks directly via out BlockSpec index_maps
    # (no permute/contiguous HBM copies). 1/temperature folded into Q.
    qh = q_proj_pallas(q, wq_h, bq_h, 1.0 / temperature)
    kh, vh = kv_proj_pallas(k, v, wk_h, bk_h, wv_h, bv_h)

    mask_i8 = mask.astype(jnp.int8)           # 4x less mask HBM traffic
    ctx, attn = attention_pallas(qh, kh, vh, mask_i8)

    out = fc_residual_layernorm_pallas(ctx, wfc_h, params["fc_b"],
                                       residual, params["ln_g"], params["ln_b"])
    # Free reshape (same memory layout) to PyTorch's (n_head*sz_b, Lq, Lk).
    return out, attn.reshape(n_head * sz_b, len_q, len_k)


def init_params(key, n_head, d_model, d_k, d_v):
    ks = jax.random.split(key, 8)
    std_qk = math.sqrt(2.0 / (d_model + d_k))
    std_v = math.sqrt(2.0 / (d_model + d_v))
    std_fc = math.sqrt(2.0 / (n_head * d_v + d_model))   # xavier_normal for fc
    return {
        "w_qs_w": std_qk * jax.random.normal(ks[0], (n_head * d_k, d_model), jnp.float32),
        "w_qs_b": 0.01 * jax.random.normal(ks[1], (n_head * d_k,), jnp.float32),
        "w_ks_w": std_qk * jax.random.normal(ks[2], (n_head * d_k, d_model), jnp.float32),
        "w_ks_b": 0.01 * jax.random.normal(ks[3], (n_head * d_k,), jnp.float32),
        "w_vs_w": std_v * jax.random.normal(ks[4], (n_head * d_v, d_model), jnp.float32),
        "w_vs_b": 0.01 * jax.random.normal(ks[5], (n_head * d_v,), jnp.float32),
        "fc_w": std_fc * jax.random.normal(ks[6], (d_model, n_head * d_v), jnp.float32),
        "fc_b": 0.01 * jax.random.normal(ks[7], (d_model,), jnp.float32),
        "ln_g": jnp.ones((d_model,), jnp.float32),
        "ln_b": jnp.zeros((d_model,), jnp.float32),
    }


if __name__ == "__main__":
    n_head, d_model, d_k, d_v = 2, 32, 8, 8
    sz_b, seq = 2, 8

    key = jax.random.PRNGKey(0)
    kq, kk, kv, kp = jax.random.split(key, 4)
    q = jax.random.normal(kq, (sz_b, seq, d_model), jnp.float32)
    k = jax.random.normal(kk, (sz_b, seq, d_model), jnp.float32)
    v = jax.random.normal(kv, (sz_b, seq, d_model), jnp.float32)

    # causal-style mask: nonzero (True) entries get -inf before softmax
    mask = jnp.triu(jnp.ones((seq, seq), jnp.int32), k=1)
    mask = jnp.broadcast_to(mask, (sz_b, seq, seq))

    params = init_params(kp, n_head, d_model, d_k, d_v)

    out, attn = multi_head_attention(q, k, v, mask, params,
                                     n_head=n_head, d_k=d_k, d_v=d_v)
    jax.block_until_ready((out, attn))

    assert out.shape == (sz_b, seq, d_model)
    assert attn.shape == (n_head * sz_b, seq, seq)
    assert bool(jnp.isfinite(out).all())
    print("KERNEL_OK")
</pallas_src>

<mosaic_0001>
module attributes {stable_mosaic.version = 11 : i64} {
  func.func @_q_proj_kernel(%arg0: i32, %arg1: i32, %arg2: i32, %arg3: memref<1x8x32xf32, #tpu.memory_space<vmem>>, %arg4: memref<1x32x8xf32, #tpu.memory_space<vmem>>, %arg5: memref<1x1x8xf32, #tpu.memory_space<vmem>>, %arg6: memref<1x1x8x8xf32, #tpu.memory_space<vmem>>) attributes {dimension_semantics = [#tpu.dimension_semantics<parallel>, #tpu.dimension_semantics<parallel>, #tpu.dimension_semantics<parallel>], iteration_bounds = array<i64: 2, 2, 1>, scalar_prefetch = 0 : i64, scratch_operands = 0 : i64, tpu.core_type = #tpu.core_type<tc>, window_params = [{transform_indices = @transform_0, window_bounds = array<i64: 1, 8, 32>}, {transform_indices = @transform_1, window_bounds = array<i64: 1, 32, 8>}, {transform_indices = @transform_2, window_bounds = array<i64: 1, 1, 8>}, {transform_indices = @transform_3, window_bounds = array<i64: 1, 1, 8, 8>}]} {
    %c0 = arith.constant 0 : index
    %c0_0 = arith.constant 0 : index
    %c0_1 = arith.constant 0 : index
    %0 = vector.load %arg3[%c0, %c0_0, %c0_1] : memref<1x8x32xf32, #tpu.memory_space<vmem>>, vector<1x8x32xf32>
    %1 = vector.shape_cast %0 : vector<1x8x32xf32> to vector<8x32xf32>
    %c0_2 = arith.constant 0 : index
    %c0_3 = arith.constant 0 : index
    %c0_4 = arith.constant 0 : index
    %2 = vector.load %arg4[%c0_2, %c0_3, %c0_4] : memref<1x32x8xf32, #tpu.memory_space<vmem>>, vector<1x32x8xf32>
    %3 = vector.shape_cast %2 : vector<1x32x8xf32> to vector<32x8xf32>
    %cst = arith.constant dense<0.000000e+00> : vector<8x8xf32>
    %4 = tpu.matmul %1, %3, %cst {dimension_numbers = #tpu.dot_dimension_numbers<[1], [0], [0], [1], [0, 0, 1, 1], [], []>} : vector<8x32xf32>, vector<32x8xf32>, vector<8x8xf32> -> vector<8x8xf32>
    %c0_5 = arith.constant 0 : index
    %c0_6 = arith.constant 0 : index
    %c0_7 = arith.constant 0 : index
    %5 = vector.load %arg5[%c0_5, %c0_6, %c0_7] : memref<1x1x8xf32, #tpu.memory_space<vmem>>, vector<1x1x8xf32>
    %6 = vector.shape_cast %5 : vector<1x1x8xf32> to vector<1x8xf32>
    %7 = vector.broadcast %6 : vector<1x8xf32> to vector<8x8xf32>
    %8 = arith.addf %4, %7 : vector<8x8xf32>
    %cst_8 = arith.constant 0.353553385 : f32
    %9 = vector.broadcast %cst_8 : f32 to vector<8x8xf32>
    %10 = arith.mulf %8, %9 : vector<8x8xf32>
    %c0_9 = arith.constant 0 : index
    %c0_10 = arith.constant 0 : index
    %c0_11 = arith.constant 0 : index
    %c0_12 = arith.constant 0 : index
    %11 = vector.load %arg6[%c0_9, %c0_10, %c0_11, %c0_12] : memref<1x1x8x8xf32, #tpu.memory_space<vmem>>, vector<1x1x8x8xf32>
    %12 = vector.shape_cast %11 : vector<1x1x8x8xf32> to vector<8x8xf32>
    %13 = vector.shape_cast %10 : vector<8x8xf32> to vector<1x1x8x8xf32>
    tpu.vector_store %arg6[%c0_9, %c0_10, %c0_11, %c0_12], %13 {strides = array<i32>} : memref<1x1x8x8xf32, #tpu.memory_space<vmem>>, vector<1x1x8x8xf32>,
    return
  }
  func.func @transform_0(%arg0: i32, %arg1: i32, %arg2: i32) -> (i32, i32, i32) {
    %c0_i32 = arith.constant 0 : i32
    %c0_i32_0 = arith.constant 0 : i32
    return %arg1, %arg2, %c0_i32 : i32, i32, i32
  }
  func.func @transform_1(%arg0: i32, %arg1: i32, %arg2: i32) -> (i32, i32, i32) {
    %c0_i32 = arith.constant 0 : i32
    %c0_i32_0 = arith.constant 0 : i32
    %c0_i32_1 = arith.constant 0 : i32
    return %arg0, %c0_i32, %c0_i32_0 : i32, i32, i32
  }
  func.func @transform_2(%arg0: i32, %arg1: i32, %arg2: i32) -> (i32, i32, i32) {
    %c0_i32 = arith.constant 0 : i32
    %c0_i32_0 = arith.constant 0 : i32
    %c0_i32_1 = arith.constant 0 : i32
    return %arg0, %c0_i32, %c0_i32_0 : i32, i32, i32
  }
  func.func @transform_3(%arg0: i32, %arg1: i32, %arg2: i32) -> (i32, i32, i32, i32) {
    %c0_i32 = arith.constant 0 : i32
    %c0_i32_0 = arith.constant 0 : i32
    return %arg0, %arg1, %arg2, %c0_i32 : i32, i32, i32, i32
  }
}

</mosaic_0001>

<llo_original>
// kernel: tpu_custom_call.1
$region0: #{tpu_custom_call.1}
  #allocation0 [shape = 'u32[]', space=smem, size = 0x4, offset = 0x4, fixed_abs, tag = 'smem constant byte address 0x4 - core index']
  #allocation1 [shape = 'u32[144,128]{1,0:T(1,128)}', space=vmem, size = 0x12000, scoped, tag = 'internal scratch']
  %s0 = inlined_call_operand.vmem [shape: f32[2,8,32], index: 0, kind: input, shape index: {}]
  %s1 = inlined_call_operand.vmem [shape: f32[2,32,8], index: 1, kind: input, shape index: {}]
  %s2 = inlined_call_operand.vmem [shape: f32[2,1,8], index: 2, kind: input, shape index: {}]
  %s3 = inlined_call_operand.hbm [shape: f32[2,2,8,8], index: 3, kind: output, shape index: {}]
  %s4 = sld [smem:[#allocation0]]
  $region45: #{tpu_custom_call.1} parent=0
    _
  %s6 = ssub.s32 1, %s4
  %s7 = scalar_select 0, %s6, %s4
  $region1: #{tpu_custom_call.1} parent=0
    #allocation2 [shape = 'u8[8192]{0}', space=vmem, size = 0x2000, scoped, tag = 'output window, operand 0']
    #allocation3 [shape = 's32[2]{0}', space=sflag, size = 0x8, scoped, tag = 'scoped memory for tpu_custom_call.1']
    %8 = vsyncpa [#allocation3], 0
    %s9 = scalar_lea.sflag [#allocation3], 1
    %10 = vsyncpa %s9, 0
    loop: start=0, step=1, limit=6
    $region2: #{tpu_custom_call.1} parent=1 // loop_pre_header
      _
    $region3: #{tpu_custom_call.1} parent=1 // loop_header
      %s12 = sphi 0, %s16
      %p13 = scmp.ge.s32.totalorder %s12, 6
      %s19 = sphi 0, %s38
      %s20 = sphi 0, %s34
      %s21 = sphi 0, %s30
      %s22 = sphi 0, %s19
      %s23 = sphi 0, %s20
      %s24 = sphi 0, %s21
      %s25 = sphi 0, %s22
      %s26 = sphi 0, %s23
      %s27 = sphi 0, %s24
      %s43 = sphi 0, %s45
      %s46 = sphi 0, %s43
      %s47 = sphi 0, %s46
      %s63 = sphi 0, %s47
      %s69 = sphi 0, %s71
      %s72 = sphi 0, %s69
      %s73 = sphi 0, %s72
      %s89 = sphi 0, %s73
      %s95 = sphi 0, %s97
      %s98 = sphi 0, %s95
      %s99 = sphi 0, %s98
      %s115 = sphi 0, %s99
      %s125 = sphi 0, %s127
      %s128 = sphi 0, %s125
      %s129 = sphi 0, %s128
      %s145 = sphi 0, %s129
    $region4: #{tpu_custom_call.1} parent=1 // loop_header_branch
      %15 = sbr.rel (%p13) target = $region8
    $region5: #{tpu_custom_call.1} parent=1 // loop_body
      %s17 = ssub.s32 %s12, 1
      %s18 = ssub.s32 %s12, 2
      %s28 = sadd.s32 1, %s21
      %p29 = scmp.ge.s32.totalorder %s28, 1
      %s30 = scalar_select %p29, 0, %s28
      %s31 = sadd.s32 1, %s20
      %s32 = scalar_select %p29, %s31, %s20
      %p33 = scmp.ge.s32.totalorder %s32, 2
      %s34 = scalar_select %p33, 0, %s32
      %s35 = sadd.s32 1, %s19
      %s36 = scalar_select %p33, %s35, %s19
      %p37 = scmp.ge.s32.totalorder %s36, 2
      %s38 = scalar_select %p37, 0, %s36
      %s39 = ssub.s32 %s20, %s34
      %s40 = ssub.s32 %s21, %s30
      %s41 = sor.u32 %s39, %s40
      %p42 = scmp.eq.s32.totalorder %s41, 0
      %s44 = sadd.s32 %s43, 1
      %s45 = scalar_select %p42, %s43, %s44
      %p48 = pneg %p42
      %p49 = scmp.eq.s32.totalorder %s12, 3
      %p50 = por %p48, %p49
      %p51 = scmp.ne.s32.totalorder %s43, %s46
      %p52 = scmp.eq.s32.totalorder %s12, 0
      %p53 = por %p51, %p52
      %p54 = scmp.ne.s32.totalorder %s43, %s46
      %p55 = scmp.eq.s32.totalorder %s17, 3
      %p56 = por %p54, %p55
      %p57 = scmp.ne.s32.totalorder %s46, %s47
      %p58 = scmp.eq.s32.totalorder %s17, 0
      %p59 = por %p57, %p58
      %p60 = scmp.ne.s32.totalorder %s46, %s47
      %p61 = scmp.eq.s32.totalorder %s18, 3
      %p62 = por %p60, %p61
      %p64 = scmp.ne.s32.totalorder %s47, %s63
      %p65 = scmp.eq.s32.totalorder %s18, 0
      %p66 = por %p64, %p65
      %s67 = ssub.s32 %s19, %s38
      %p68 = scmp.eq.s32.totalorder %s67, 0
      %s70 = sadd.s32 %s69, 1
      %s71 = scalar_select %p68, %s69, %s70
      %p74 = pneg %p68
      %p75 = scmp.eq.s32.totalorder %s12, 3
      %p76 = por %p74, %p75
      %p77 = scmp.ne.s32.totalorder %s69, %s72
      %p78 = scmp.eq.s32.totalorder %s12, 0
      %p79 = por %p77, %p78
      %p80 = scmp.ne.s32.totalorder %s69, %s72
      %p81 = scmp.eq.s32.totalorder %s17, 3
      %p82 = por %p80, %p81
      %p83 = scmp.ne.s32.totalorder %s72, %s73
      %p84 = scmp.eq.s32.totalorder %s17, 0
      %p85 = por %p83, %p84
      %p86 = scmp.ne.s32.totalorder %s72, %s73
      %p87 = scmp.eq.s32.totalorder %s18, 3
      %p88 = por %p86, %p87
      %p90 = scmp.ne.s32.totalorder %s73, %s89
      %p91 = scmp.eq.s32.totalorder %s18, 0
      %p92 = por %p90, %p91
      %s93 = ssub.s32 %s19, %s38
      %p94 = scmp.eq.s32.totalorder %s93, 0
      %s96 = sadd.s32 %s95, 1
      %s97 = scalar_select %p94, %s95, %s96
      %p100 = pneg %p94
      %p101 = scmp.eq.s32.totalorder %s12, 3
      %p102 = por %p100, %p101
      %p103 = scmp.ne.s32.totalorder %s95, %s98
      %p104 = scmp.eq.s32.totalorder %s12, 0
      %p105 = por %p103, %p104
      %p106 = scmp.ne.s32.totalorder %s95, %s98
      %p107 = scmp.eq.s32.totalorder %s17, 3
      %p108 = por %p106, %p107
      %p109 = scmp.ne.s32.totalorder %s98, %s99
      %p110 = scmp.eq.s32.totalorder %s17, 0
      %p111 = por %p109, %p110
      %p112 = scmp.ne.s32.totalorder %s98, %s99
      %p113 = scmp.eq.s32.totalorder %s18, 3
      %p114 = por %p112, %p113
      %p116 = scmp.ne.s32.totalorder %s99, %s115
      %p117 = scmp.eq.s32.totalorder %s18, 0
      %p118 = por %p116, %p117
      %s119 = ssub.s32 %s19, %s38
      %s120 = ssub.s32 %s20, %s34
      %s121 = sor.u32 %s119, %s120
      %s122 = ssub.s32 %s21, %s30
      %s123 = sor.u32 %s121, %s122
      %p124 = scmp.eq.s32.totalorder %s123, 0
      %s126 = sadd.s32 %s125, 1
      %s127 = scalar_select %p124, %s125, %s126
      %p130 = pneg %p124
      %p131 = scmp.eq.s32.totalorder %s12, 3
      %p132 = por %p130, %p131
      %p133 = scmp.ne.s32.totalorder %s125, %s128
      %p134 = scmp.eq.s32.totalorder %s12, 0
      %p135 = por %p133, %p134
      %p136 = scmp.ne.s32.totalorder %s125, %s128
      %p137 = scmp.eq.s32.totalorder %s17, 3
      %p138 = por %p136, %p137
      %p139 = scmp.ne.s32.totalorder %s128, %s129
      %p140 = scmp.eq.s32.totalorder %s17, 0
      %p141 = por %p139, %p140
      %p142 = scmp.ne.s32.totalorder %s128, %s129
      %p143 = scmp.eq.s32.totalorder %s18, 3
      %p144 = por %p142, %p143
      %p146 = scmp.ne.s32.totalorder %s129, %s145
      %p147 = scmp.eq.s32.totalorder %s18, 0
      %p148 = por %p146, %p147
      %p149 = scmp.le.s32.totalorder 1, %s12
      %p150 = scmp.lt.s32.totalorder %s12, 5
      %p151 = pnand %p149, %p150
      %p152 = pneg %p151
      // Predicated region
      $region9: #{tpu_custom_call.1} parent=5 // pred_check
        _
      $region10: #{tpu_custom_call.1} parent=5 // pred_check_branch
        %154 = sbr.rel (%p151) target = $region12
      $region11: #{tpu_custom_call.1} parent=5 // pred_region
        %s155 = ssub.s32 %s12, 1
      $region12: #{tpu_custom_call.1} parent=5 // pred_fallthru
        _
      %p156 = scmp.lt.s32.totalorder %s12, 4
      // Predicated region
      $region13: #{tpu_custom_call.1} parent=5 // pred_check
        %p157 = pneg %p156
      $region14: #{tpu_custom_call.1} parent=5 // pred_check_branch
        %159 = sbr.rel (%p157) target = $region16
      $region15: #{tpu_custom_call.1} parent=5 // pred_region
        // Predicated region
        $region17: #{tpu_custom_call.1} parent=15 // pred_check
          %p160 = pneg %p53
        $region18: #{tpu_custom_call.1} parent=15 // pred_check_branch
          %162 = sbr.rel (%p160) target = $region20
        $region19: #{tpu_custom_call.1} parent=15 // pred_region
          %p163 = scmp.lt.s32.totalorder %s20, 1
          %s164 = scalar_select %p163, %s20, 1
          %p165 = scmp.lt.s32.totalorder %s21, 0
          %s166 = scalar_select %p165, %s21, 0
          %s167 = sadd.s32 %s166, %s164
          %s168 = smul.addr %s167, 8
          %s169 = scalar_lea.vmem %s0, %s168
        $region20: #{tpu_custom_call.1} parent=15 // pred_fallthru
          _
        // Predicated region
        $region21: #{tpu_custom_call.1} parent=15 // pred_check
          %p170 = pneg %p79
        $region22: #{tpu_custom_call.1} parent=15 // pred_check_branch
          %172 = sbr.rel (%p170) target = $region24
        $region23: #{tpu_custom_call.1} parent=15 // pred_region
          %p173 = scmp.lt.s32.totalorder %s19, 1
          %s174 = scalar_select %p173, %s19, 1
          %s175 = smul.addr %s174, 4
          %s176 = smul.addr %s175, 8
          %s177 = scalar_lea.vmem %s1, %s176
        $region24: #{tpu_custom_call.1} parent=15 // pred_fallthru
          _
        // Predicated region
        $region25: #{tpu_custom_call.1} parent=15 // pred_check
          %p178 = pneg %p105
        $region26: #{tpu_custom_call.1} parent=15 // pred_check_branch
          %180 = sbr.rel (%p178) target = $region28
        $region27: #{tpu_custom_call.1} parent=15 // pred_region
          %p181 = scmp.lt.s32.totalorder %s19, 1
          %s182 = scalar_select %p181, %s19, 1
          %s183 = scalar_lea.vmem %s2, %s182
        $region28: #{tpu_custom_call.1} parent=15 // pred_fallthru
          _
      $region16: #{tpu_custom_call.1} parent=5 // pred_fallthru
        _
      %p184 = scmp.le.s32.totalorder 1, %s12
      %p185 = scmp.lt.s32.totalorder %s12, 5
      %p186 = pnand %p184, %p185
      %p187 = pneg %p186
      // Predicated region
      $region29: #{tpu_custom_call.1} parent=5 // pred_check
        _
      $region30: #{tpu_custom_call.1} parent=5 // pred_check_branch
        %189 = sbr.rel (%p186) target = $region32
      $region31: #{tpu_custom_call.1} parent=5 // pred_region
        %s190 = ssub.s32 %s12, 1
        %p191 = scmp.lt.s32.totalorder %s23, 1
        %s192 = scalar_select %p191, %s23, 1
        %p193 = scmp.lt.s32.totalorder %s24, 0
        %s194 = scalar_select %p193, %s24, 0
        %s195 = sadd.s32 %s194, %s192
        %s196 = smul.addr %s195, 8
        %s197 = scalar_lea.vmem %s0, %s196
        %p198 = pneg %p59
        %p199 = pneg %p56
        %p200 = scmp.lt.s32.totalorder %s22, 1
        %s201 = scalar_select %p200, %s22, 1
        %s202 = smul.addr %s201, 4
        %s203 = smul.addr %s202, 8
        %s204 = scalar_lea.vmem %s1, %s203
        %p205 = pneg %p85
        %p206 = pneg %p82
        %p207 = scmp.lt.s32.totalorder %s22, 1
        %s208 = scalar_select %p207, %s22, 1
        %s209 = scalar_lea.vmem %s2, %s208
        %p210 = pneg %p111
        %p211 = pneg %p108
        %p212 = pneg %p141
        %p213 = pneg %p138
        %s214 = sand.u32 %s128, 1
        %s215 = scalar_lea.sflag [#allocation3], %s214
        %s216 = sand.u32 %s128, 1
        %s217 = smul.addr %s216, 8
        %s218 = scalar_lea.vmem [#allocation2], %s217
        %p219 = scmp.lt.s32.totalorder %s23, 1
        %s220 = scalar_select %p219, %s23, 1
        %p221 = scmp.lt.s32.totalorder %s24, 0
        %s222 = scalar_select %p221, %s24, 0
        %s223 = sadd.s32 %s222, %s220
        %s224 = smul.addr %s223, 8
        %s225 = scalar_lea.vmem %s0, %s224
        %p226 = scmp.lt.s32.totalorder %s22, 1
        %s227 = scalar_select %p226, %s22, 1
        %s228 = smul.addr %s227, 4
        %s229 = smul.addr %s228, 8
        %s230 = scalar_lea.vmem %s1, %s229
        %p231 = scmp.lt.s32.totalorder %s22, 1
        %s232 = scalar_select %p231, %s22, 1
        %s233 = scalar_lea.vmem %s2, %s232
        %v234 = vld [vmem:[%s225] sm:$0xff]
        %v235 = vld [vmem:[%s230] sm:$0xff]
        %v236 = vld [vmem:[%s230 + $0x8] sm:$0xff]
        %v237 = vld [vmem:[%s230 + $0x10] sm:$0xff]
        %v238 = vld [vmem:[%s230 + $0x18] sm:$0xff]
        %v239 = vld [vmem:[%s233] sm:$0x1]
        %v241 = vlaneseq
        %v242 = vshrl.u32 %v241, 7
        %v243 = vsub.s32 0, %v242
        %v244 = vrot.slane %v239, %v243
        %vm246 = vcmask 261120
        %v248 = vsel %vm246, %v234, 0
        %250 = vmatprep.subr.mxu0 0.0
        %251 = vmatpush1.msra.mxu0 %v235
        %252 = vmatprep.subr.mxu0 0.0
        %253 = vmatpush1.msra.mxu0 %v236
        %254 = vmatprep.subr.mxu0 0.0
        %255 = vmatpush1.msra.mxu0 %v237
        %256 = vmatprep.subr.mxu0 0.0
        %257 = vmatpush1.msra.mxu0 %v238
        %258 = vmatprep.subr.mxu0 0.0
        %259 = vmatpush1.msra.mxu0 0.0
        %260 = vmatprep.subr.mxu0 0.0
        %261 = vmatpush1.msra.mxu0 0.0
        %262 = vmatprep.subr.mxu0 0.0
        %263 = vmatpush1.msra.mxu0 0.0
        %264 = vmatprep.subr.mxu0 0.0
        %265 = vmatpush1.msra.mxu0 0.0
        %266 = vmatprep.subr.mxu0 0.0
        %267 = vmatpush1.msra.mxu0 0.0
        %268 = vmatprep.subr.mxu0 0.0
        %269 = vmatpush1.msra.mxu0 0.0
        %270 = vmatprep.subr.mxu0 0.0
        %271 = vmatpush1.msra.mxu0 0.0
        %272 = vmatprep.subr.mxu0 0.0
        %273 = vmatpush1.msra.mxu0 0.0
        %274 = vmatprep.subr.mxu0 0.0
        %275 = vmatpush1.msra.mxu0 0.0
        %276 = vmatprep.subr.mxu0 0.0
        %277 = vmatpush1.msra.mxu0 0.0
        %278 = vmatprep.subr.mxu0 0.0
        %279 = vmatpush1.msra.mxu0 0.0
        %280 = vmatprep.subr.mxu0 0.0
        %281 = vmatpush1.msra.mxu0 0.0
        %282 = vmatprep.subr.mxu0 0.0
        %283 = vmatpush1.msra.mxu0 0.0
        %284 = vmatprep.subr.mxu0 0.0
        %285 = vmatpush1.msra.mxu0 0.0
        %286 = vmatprep.subr.mxu0 0.0
        %287 = vmatpush1.msra.mxu0 0.0
        %288 = vmatprep.subr.mxu0 0.0
        %289 = vmatpush1.msra.mxu0 0.0
        %290 = vmatprep.subr.mxu0 0.0
        %291 = vmatpush1.msra.mxu0 0.0
        %292 = vmatprep.subr.mxu0 0.0
        %293 = vmatpush1.msra.mxu0 0.0
        %294 = vmatprep.subr.mxu0 0.0
        %295 = vmatpush1.msra.mxu0 0.0
        %296 = vmatprep.subr.mxu0 0.0
        %297 = vmatpush1.msra.mxu0 0.0
        %298 = vmatprep.subr.mxu0 0.0
        %299 = vmatpush1.msra.mxu0 0.0
        %300 = vmatprep.subr.mxu0 0.0
        %301 = vmatpush1.msra.mxu0 0.0
        %302 = vmatprep.subr.mxu0 0.0
        %303 = vmatpush1.msra.mxu0 0.0
        %304 = vmatprep.subr.mxu0 0.0
        %305 = vmatpush1.msra.mxu0 0.0
        %306 = vmatprep.subr.mxu0 0.0
        %307 = vmatpush1.msra.mxu0 0.0
        %308 = vmatprep.subr.mxu0 0.0
        %309 = vmatpush1.msra.mxu0 0.0
        %310 = vmatprep.subr.mxu0 0.0
        %311 = vmatpush1.msra.mxu0 0.0
        %312 = vmatprep.subr.mxu0 0.0
        %313 = vmatpush1.msra.mxu0 0.0
        %314 = vmatprep.mubr.f32.mxu0 0.0
        %315 = vmatmul.mubr.f32.gmra.mrb[0].mxu0 %v248
        %v316 = vpop.f32.mrb[0].mxu0
        %v317 = vadd.f32 %v244, %v316
        %v318 = vpop.f32.mrb[0].mxu0
        %319 = vdwg.mxu0
        %v320 = vmul.f32 %v317, 0.35355338
        %vm321 = vcmask 64512
        %322 = vst.msk [vmem:[%s218] sm:$0xff] %vm321, %v320
        %s323 = sand.u32 %s128, 1
        %s324 = scalar_lea.sflag [#allocation3], %s323
        %s325 = sand.u32 %s128, 1
        %s326 = smul.addr %s325, 8
        %s327 = scalar_lea.vmem [#allocation2], %s326
        // Predicated region
        $region33: #{tpu_custom_call.1} parent=31 // pred_check
          %p328 = pneg %p138
        $region34: #{tpu_custom_call.1} parent=31 // pred_check_branch
          %330 = sbr.rel (%p328) target = $region36
        $region35: #{tpu_custom_call.1} parent=31 // pred_region
          %s332 = ssub.s32 128, 128
          %333 = vsyncadd %s324, %s332
          %s334 = sadd.s32 %s24, %s23
          %s335 = smul.addr %s22, 2
          %s336 = sadd.s32 %s334, %s335
          %s337 = smul.addr %s336, 128
          %s338 = scalar_lea.hbm %s3, %s337
          %s340 = sshll.u32 %s327, 4
          %s341 = int_to_ptr.vmem [resolvable:$true] %s340
          %343 = dma.vmem_to_hbm [thread:$0]  %s341, 128, %s338, %s324
        $region36: #{tpu_custom_call.1} parent=31 // pred_fallthru
          _
      $region32: #{tpu_custom_call.1} parent=5 // pred_fallthru
        _
      %p344 = scmp.le.s32.totalorder 2, %s12
      // Predicated region
      $region37: #{tpu_custom_call.1} parent=5 // pred_check
        %p345 = pneg %p344
      $region38: #{tpu_custom_call.1} parent=5 // pred_check_branch
        %347 = sbr.rel (%p345) target = $region40
      $region39: #{tpu_custom_call.1} parent=5 // pred_region
        %s348 = ssub.s32 %s12, 2
        // Predicated region
        $region41: #{tpu_custom_call.1} parent=39 // pred_check
          %p349 = pneg %p144
        $region42: #{tpu_custom_call.1} parent=39 // pred_check_branch
          %351 = sbr.rel (%p349) target = $region44
        $region43: #{tpu_custom_call.1} parent=39 // pred_region
          %s352 = sand.u32 %s129, 1
          %s353 = scalar_lea.sflag [#allocation3], %s352
          %s354 = sand.u32 %s129, 1
          %s355 = smul.addr %s354, 8
          %s356 = scalar_lea.vmem [#allocation2], %s355
          %357 = dma.done %s353, 128
        $region44: #{tpu_custom_call.1} parent=39 // pred_fallthru
          _
      $region40: #{tpu_custom_call.1} parent=5 // pred_fallthru
        _
    $region6: #{tpu_custom_call.1} parent=1 // loop_footer
      %s16 = sadd.s32 1, %s12
    $region7: #{tpu_custom_call.1} parent=1 // loop_footer_branch
      %11 = sbr.rel target = $region3
    $region8: #{tpu_custom_call.1} parent=1 // loop_exit
      _
    %358 = vsyncpa [#allocation3], 1
    %s359 = scalar_lea.sflag [#allocation3], 1
    %360 = vsyncpa %s359, 1

</llo_original>
